<compile_context>
chip_gen: v6e
topology: v6e:2x2x1
jax: 0.10.0
libtpu: 0.0.40
codegen_flags: <defaults>
</compile_context>

<pallas_src>
import jax
import jax.numpy as jnp
from jax.experimental import pallas as pl
from jax.experimental.pallas import tpu as pltpu


DIM_DESC = 256


def _round_up(x, m):
    return (x + m - 1) // m * m


def _embed_l2norm_kernel(x_ref, w_ref, o_ref, acc_ref):
    # x_ref:   [TM, TK]        bf16 flattened-patch tile
    # w_ref:   [TK, DIM_DESC]  bf16 weight tile
    # o_ref:   [TM, DIM_DESC]  f32 normalized descriptors (written on last k)
    # acc_ref: [TM, DIM_DESC]  f32 accumulator scratch (resident across k)
    k = pl.program_id(1)

    @pl.when(k == 0)
    def _init():
        acc_ref[...] = jnp.zeros_like(acc_ref)

    acc_ref[...] += jnp.dot(
        x_ref[...], w_ref[...], preferred_element_type=jnp.float32
    )

    @pl.when(k == pl.num_programs(1) - 1)
    def _finalize():
        emb = acc_ref[...]
        # Exact l2_norm semantics (x / ||x||_2, no eps), as rsqrt * x so the
        # transcendental goes to the EUP slot and the VPU only multiplies.
        inv = jax.lax.rsqrt(jnp.sum(emb * emb, axis=-1, keepdims=True))
        o_ref[...] = (emb * inv).astype(o_ref.dtype)


def embedding_net_roi_summer(patch, w_embed):
    """patch: [B, C, H, W] (NCHW).  w_embed: [C*H*W, DIM_DESC].
    Returns [B, DIM_DESC] f32 l2-normalized descriptors."""
    B = patch.shape[0]
    F = patch.shape[1] * patch.shape[2] * patch.shape[3]
    assert w_embed.shape == (F, DIM_DESC)

    # Tile sizes: TM sublane-aligned (mult of 8, capped at 128);
    #             TK MXU/lane-aligned (mult of 128, default 512).
    tm = min(128, _round_up(B, 8))
    tk = 512 if F >= 512 else _round_up(F, 128)
    b_pad = _round_up(B, tm)
    f_pad = _round_up(F, tk)

    # Row-major flatten (same as torch .view) and cast to bf16 for streaming.
    x = patch.reshape(B, F).astype(jnp.bfloat16)
    w = w_embed.astype(jnp.bfloat16)
    if b_pad != B or f_pad != F:
        x = jnp.pad(x, ((0, b_pad - B), (0, f_pad - F)))
    if f_pad != F:
        w = jnp.pad(w, ((0, f_pad - F), (0, 0)))

    grid = (b_pad // tm, f_pad // tk)

    cost = pl.CostEstimate(
        flops=2 * b_pad * f_pad * DIM_DESC,
        transcendentals=b_pad,
        bytes_accessed=(b_pad * f_pad + f_pad * DIM_DESC) * 2
        + b_pad * DIM_DESC * 4,
    )

    out = pl.pallas_call(
        _embed_l2norm_kernel,
        out_shape=jax.ShapeDtypeStruct((b_pad, DIM_DESC), jnp.float32),
        grid_spec=pltpu.PrefetchScalarGridSpec(
            num_scalar_prefetch=0,
            grid=grid,
            in_specs=[
                pl.BlockSpec((tm, tk), lambda i, k: (i, k)),
                pl.BlockSpec((tk, DIM_DESC), lambda i, k: (k, 0)),
            ],
            out_specs=pl.BlockSpec((tm, DIM_DESC), lambda i, k: (i, 0)),
            scratch_shapes=[pltpu.VMEM((tm, DIM_DESC), jnp.float32)],
        ),
        compiler_params=pltpu.CompilerParams(
            dimension_semantics=("parallel", "arbitrary"),
            vmem_limit_bytes=32 * 1024 * 1024,
        ),
        cost_estimate=cost,
    )(x, w)

    # Drop padded rows; already [B, DIM_DESC] == .view(-1, dim_desc).
    return out[:B]


def make_params(key, in_features):
    # Deterministic synthetic embedding weights (stand-in backbone).
    w = jax.random.normal(key, (in_features, DIM_DESC), dtype=jnp.float32)
    return w * (1.0 / jnp.sqrt(jnp.float32(in_features)))


if __name__ == "__main__":
    key = jax.random.PRNGKey(0)
    k_patch, k_w = jax.random.split(key)

    B, C, H, W = 2, 4, 16, 16
    patch = jax.random.normal(k_patch, (B, C, H, W), dtype=jnp.float32)
    w_embed = make_params(k_w, C * H * W)

    descr = embedding_net_roi_summer(patch, w_embed)
    descr = jax.block_until_ready(descr)

    # Pure-JAX reference with the same numerics (bf16 stream, f32 accum/norm).
    x_ref = patch.reshape(B, -1).astype(jnp.bfloat16)
    emb_ref = jnp.dot(
        x_ref, w_embed.astype(jnp.bfloat16), preferred_element_type=jnp.float32
    )
    ref = emb_ref / jnp.linalg.norm(emb_ref, axis=-1, keepdims=True)

    assert descr.shape == (B, DIM_DESC)
    norms = jnp.linalg.norm(descr, axis=-1)
    assert bool(jnp.all(jnp.abs(norms - 1.0) < 1e-4))
    assert bool(jnp.max(jnp.abs(descr - ref)) < 1e-3)

    print("KERNEL_OK")
</pallas_src>

<mosaic_0001>
module attributes {stable_mosaic.version = 11 : i64} {
  func.func @_embed_l2norm_kernel(%arg0: i32, %arg1: i32, %arg2: memref<8x512xbf16, #tpu.memory_space<vmem>>, %arg3: memref<512x256xbf16, #tpu.memory_space<vmem>>, %arg4: memref<8x256xf32, #tpu.memory_space<vmem>>, %arg5: memref<8x256xf32, #tpu.memory_space<vmem>>) attributes {dimension_semantics = [#tpu.dimension_semantics<parallel>, #tpu.dimension_semantics<arbitrary>], iteration_bounds = array<i64: 1, 2>, scalar_prefetch = 0 : i64, scratch_operands = 1 : i64, tpu.core_type = #tpu.core_type<tc>, window_params = [{transform_indices = @transform_0, window_bounds = array<i64: 8, 512>}, {transform_indices = @transform_1, window_bounds = array<i64: 512, 256>}, {transform_indices = @transform_2, window_bounds = array<i64: 8, 256>}]} {
    %c0_i32 = arith.constant 0 : i32
    %0 = arith.cmpi eq, %arg1, %c0_i32 : i32
    %1 = arith.extui %0 : i1 to i32
    %c0_i32_0 = arith.constant 0 : i32
    %2 = arith.cmpi ne, %1, %c0_i32_0 : i32
    scf.if %2 {
      %cst_9 = arith.constant 0.000000e+00 : f32
      %12 = vector.broadcast %cst_9 : f32 to vector<8x256xf32>
      %c0_10 = arith.constant 0 : index
      %c0_11 = arith.constant 0 : index
      %13 = vector.load %arg5[%c0_10, %c0_11] : memref<8x256xf32, #tpu.memory_space<vmem>>, vector<8x256xf32>
      tpu.vector_store %arg5[%c0_10, %c0_11], %12 {strides = array<i32>} : memref<8x256xf32, #tpu.memory_space<vmem>>, vector<8x256xf32>,
    } else {
    }
    %c0 = arith.constant 0 : index
    %c0_1 = arith.constant 0 : index
    %3 = vector.load %arg5[%c0, %c0_1] : memref<8x256xf32, #tpu.memory_space<vmem>>, vector<8x256xf32>
    %c0_2 = arith.constant 0 : index
    %c0_3 = arith.constant 0 : index
    %4 = vector.load %arg2[%c0_2, %c0_3] : memref<8x512xbf16, #tpu.memory_space<vmem>>, vector<8x512xbf16>
    %c0_4 = arith.constant 0 : index
    %c0_5 = arith.constant 0 : index
    %5 = vector.load %arg3[%c0_4, %c0_5] : memref<512x256xbf16, #tpu.memory_space<vmem>>, vector<512x256xbf16>
    %cst = arith.constant dense<0.000000e+00> : vector<8x256xf32>
    %6 = tpu.matmul %4, %5, %cst {dimension_numbers = #tpu.dot_dimension_numbers<[1], [0], [0], [1], [0, 0, 1, 1], [], []>} : vector<8x512xbf16>, vector<512x256xbf16>, vector<8x256xf32> -> vector<8x256xf32>
    %7 = arith.addf %3, %6 : vector<8x256xf32>
    %c0_6 = arith.constant 0 : index
    %c0_7 = arith.constant 0 : index
    %8 = vector.load %arg5[%c0_6, %c0_7] : memref<8x256xf32, #tpu.memory_space<vmem>>, vector<8x256xf32>
    tpu.vector_store %arg5[%c0_6, %c0_7], %7 {strides = array<i32>} : memref<8x256xf32, #tpu.memory_space<vmem>>, vector<8x256xf32>,
    %c1_i32 = arith.constant 1 : i32
    %9 = arith.cmpi eq, %arg1, %c1_i32 : i32
    %10 = arith.extui %9 : i1 to i32
    %c0_i32_8 = arith.constant 0 : i32
    %11 = arith.cmpi ne, %10, %c0_i32_8 : i32
    scf.if %11 {
      %c0_9 = arith.constant 0 : index
      %c0_10 = arith.constant 0 : index
      %12 = vector.load %arg5[%c0_9, %c0_10] : memref<8x256xf32, #tpu.memory_space<vmem>>, vector<8x256xf32>
      %13 = arith.mulf %12, %12 : vector<8x256xf32>
      %cst_11 = arith.constant dense<0.000000e+00> : vector<8xf32>
      %14 = vector.multi_reduction <add>, %13, %cst_11 [1] : vector<8x256xf32> to vector<8xf32>
      %15 = vector.shape_cast %14 : vector<8xf32> to vector<8x1xf32>
      %16 = math.rsqrt %15 : vector<8x1xf32>
      %17 = vector.broadcast %16 : vector<8x1xf32> to vector<8x256xf32>
      %18 = arith.mulf %12, %17 : vector<8x256xf32>
      %c0_12 = arith.constant 0 : index
      %c0_13 = arith.constant 0 : index
      %19 = vector.load %arg4[%c0_12, %c0_13] : memref<8x256xf32, #tpu.memory_space<vmem>>, vector<8x256xf32>
      tpu.vector_store %arg4[%c0_12, %c0_13], %18 {strides = array<i32>} : memref<8x256xf32, #tpu.memory_space<vmem>>, vector<8x256xf32>,
    } else {
    }
    return
  }
  func.func @transform_0(%arg0: i32, %arg1: i32) -> (i32, i32) {
    %c0_i32 = arith.constant 0 : i32
    return %arg0, %arg1 : i32, i32
  }
  func.func @transform_1(%arg0: i32, %arg1: i32) -> (i32, i32) {
    %c0_i32 = arith.constant 0 : i32
    %c0_i32_0 = arith.constant 0 : i32
    return %arg1, %c0_i32 : i32, i32
  }
  func.func @transform_2(%arg0: i32, %arg1: i32) -> (i32, i32) {
    %c0_i32 = arith.constant 0 : i32
    %c0_i32_0 = arith.constant 0 : i32
    return %arg0, %c0_i32 : i32, i32
  }
}

</mosaic_0001>

<llo_original>
// kernel: tpu_custom_call.1
$region0: #{tpu_custom_call.1}
  #allocation0 [shape = 'u32[]', space=smem, size = 0x4, offset = 0x4, fixed_abs, tag = 'smem constant byte address 0x4 - core index']
  #allocation1 [shape = 'u32[144,128]{1,0:T(1,128)}', space=vmem, size = 0x12000, scoped, tag = 'internal scratch']
  #allocation2 [shape = 'f32[8,256]{1,0:T(8,128)}', space=vmem, size = 0x2000, scoped, tag = 'scratch operand']
  %s0 = inlined_call_operand.hbm [shape: bf16[8,1024], index: 0, kind: input, shape index: {}]
  %s1 = inlined_call_operand.hbm [shape: bf16[1024,256], index: 1, kind: input, shape index: {}]
  %s2 = inlined_call_operand.hbm [shape: f32[8,256], index: 2, kind: output, shape index: {}]
  %s3 = sld [smem:[#allocation0]]
  $region57: #{tpu_custom_call.1} parent=0
    _
  %s5 = ssub.s32 1, %s3
  %s6 = scalar_select 0, %s5, %s3
  $region1: #{tpu_custom_call.1} parent=0
    #allocation3 [shape = 'u8[16384]{0}', space=vmem, size = 0x4000, scoped, tag = 'input window, operand 0']
    #allocation4 [shape = 's32[2]{0}', space=sflag, size = 0x8, scoped, tag = 'scoped memory for tpu_custom_call.1']
    #allocation5 [shape = 's32[2]{0}', space=sflag, size = 0x8, scoped, tag = 'scoped memory for tpu_custom_call.1']
    #allocation6 [shape = 'u8[524288]{0}', space=vmem, size = 0x80000, scoped, tag = 'input window, operand 1']
    #allocation7 [shape = 's32[2]{0}', space=sflag, size = 0x8, scoped, tag = 'scoped memory for tpu_custom_call.1']
    #allocation8 [shape = 'u8[8192]{0}', space=vmem, size = 0x2000, scoped, tag = 'output window, operand 0, single buffered']
    %7 = vsyncpa [#allocation4], 0
    %s8 = scalar_lea.sflag [#allocation4], 1
    %9 = vsyncpa %s8, 0
    %10 = vsyncpa [#allocation7], 0
    %s11 = scalar_lea.sflag [#allocation7], 1
    %12 = vsyncpa %s11, 0
    %13 = vsyncpa [#allocation5], 0
    loop: start=0, step=1, limit=4
    $region2: #{tpu_custom_call.1} parent=1 // loop_pre_header
      _
    $region3: #{tpu_custom_call.1} parent=1 // loop_header
      %s15 = sphi 0, %s19
      %p16 = scmp.ge.s32.totalorder %s15, 4
      %s22 = sphi 0, %s34
      %s23 = sphi 0, %s30
      %s24 = sphi 0, %s22
      %s25 = sphi 0, %s23
      %s26 = sphi 0, %s24
      %s27 = sphi 0, %s25
      %s39 = sphi 0, %s41
      %s42 = sphi 0, %s39
      %s43 = sphi 0, %s42
      %s59 = sphi 0, %s43
      %s65 = sphi 0, %s67
      %s68 = sphi 0, %s65
      %s69 = sphi 0, %s68
      %s85 = sphi 0, %s69
      %s91 = sphi 0, %s93
      %s94 = sphi 0, %s91
      %s95 = sphi 0, %s94
      %s111 = sphi 0, %s95
    $region4: #{tpu_custom_call.1} parent=1 // loop_header_branch
      %18 = sbr.rel (%p16) target = $region8
    $region5: #{tpu_custom_call.1} parent=1 // loop_body
      %s20 = ssub.s32 %s15, 1
      %s21 = ssub.s32 %s15, 2
      %s28 = sadd.s32 1, %s23
      %p29 = scmp.ge.s32.totalorder %s28, 2
      %s30 = scalar_select %p29, 0, %s28
      %s31 = sadd.s32 1, %s22
      %s32 = scalar_select %p29, %s31, %s22
      %p33 = scmp.ge.s32.totalorder %s32, 1
      %s34 = scalar_select %p33, 0, %s32
      %s35 = ssub.s32 %s22, %s34
      %s36 = ssub.s32 %s23, %s30
      %s37 = sor.u32 %s35, %s36
      %p38 = scmp.eq.s32.totalorder %s37, 0
      %s40 = sadd.s32 %s39, 1
      %s41 = scalar_select %p38, %s39, %s40
      %p44 = pneg %p38
      %p45 = scmp.eq.s32.totalorder %s15, 1
      %p46 = por %p44, %p45
      %p47 = scmp.ne.s32.totalorder %s39, %s42
      %p48 = scmp.eq.s32.totalorder %s15, 0
      %p49 = por %p47, %p48
      %p50 = scmp.ne.s32.totalorder %s39, %s42
      %p51 = scmp.eq.s32.totalorder %s20, 1
      %p52 = por %p50, %p51
      %p53 = scmp.ne.s32.totalorder %s42, %s43
      %p54 = scmp.eq.s32.totalorder %s20, 0
      %p55 = por %p53, %p54
      %p56 = scmp.ne.s32.totalorder %s42, %s43
      %p57 = scmp.eq.s32.totalorder %s21, 1
      %p58 = por %p56, %p57
      %p60 = scmp.ne.s32.totalorder %s43, %s59
      %p61 = scmp.eq.s32.totalorder %s21, 0
      %p62 = por %p60, %p61
      %s63 = ssub.s32 %s23, %s30
      %p64 = scmp.eq.s32.totalorder %s63, 0
      %s66 = sadd.s32 %s65, 1
      %s67 = scalar_select %p64, %s65, %s66
      %p70 = pneg %p64
      %p71 = scmp.eq.s32.totalorder %s15, 1
      %p72 = por %p70, %p71
      %p73 = scmp.ne.s32.totalorder %s65, %s68
      %p74 = scmp.eq.s32.totalorder %s15, 0
      %p75 = por %p73, %p74
      %p76 = scmp.ne.s32.totalorder %s65, %s68
      %p77 = scmp.eq.s32.totalorder %s20, 1
      %p78 = por %p76, %p77
      %p79 = scmp.ne.s32.totalorder %s68, %s69
      %p80 = scmp.eq.s32.totalorder %s20, 0
      %p81 = por %p79, %p80
      %p82 = scmp.ne.s32.totalorder %s68, %s69
      %p83 = scmp.eq.s32.totalorder %s21, 1
      %p84 = por %p82, %p83
      %p86 = scmp.ne.s32.totalorder %s69, %s85
      %p87 = scmp.eq.s32.totalorder %s21, 0
      %p88 = por %p86, %p87
      %s89 = ssub.s32 %s22, %s34
      %p90 = scmp.eq.s32.totalorder %s89, 0
      %s92 = sadd.s32 %s91, 1
      %s93 = scalar_select %p90, %s91, %s92
      %p96 = pneg %p90
      %p97 = scmp.eq.s32.totalorder %s15, 1
      %p98 = por %p96, %p97
      %p99 = scmp.ne.s32.totalorder %s91, %s94
      %p100 = scmp.eq.s32.totalorder %s15, 0
      %p101 = por %p99, %p100
      %p102 = scmp.ne.s32.totalorder %s91, %s94
      %p103 = scmp.eq.s32.totalorder %s20, 1
      %p104 = por %p102, %p103
      %p105 = scmp.ne.s32.totalorder %s94, %s95
      %p106 = scmp.eq.s32.totalorder %s20, 0
      %p107 = por %p105, %p106
      %p108 = scmp.ne.s32.totalorder %s94, %s95
      %p109 = scmp.eq.s32.totalorder %s21, 1
      %p110 = por %p108, %p109
      %p112 = scmp.ne.s32.totalorder %s95, %s111
      %p113 = scmp.eq.s32.totalorder %s21, 0
      %p114 = por %p112, %p113
      %p115 = scmp.le.s32.totalorder 1, %s15
      %p116 = scmp.lt.s32.totalorder %s15, 3
      %p117 = pnand %p115, %p116
      %p118 = pneg %p117
      // Predicated region
      $region9: #{tpu_custom_call.1} parent=5 // pred_check
        _
      $region10: #{tpu_custom_call.1} parent=5 // pred_check_branch
        %120 = sbr.rel (%p117) target = $region12
      $region11: #{tpu_custom_call.1} parent=5 // pred_region
        %s121 = ssub.s32 %s15, 1
      $region12: #{tpu_custom_call.1} parent=5 // pred_fallthru
        _
      %p122 = scmp.lt.s32.totalorder %s15, 2
      // Predicated region
      $region13: #{tpu_custom_call.1} parent=5 // pred_check
        %p123 = pneg %p122
      $region14: #{tpu_custom_call.1} parent=5 // pred_check_branch
        %125 = sbr.rel (%p123) target = $region16
      $region15: #{tpu_custom_call.1} parent=5 // pred_region
        // Predicated region
        $region17: #{tpu_custom_call.1} parent=15 // pred_check
          %p126 = pneg %p49
        $region18: #{tpu_custom_call.1} parent=15 // pred_check_branch
          %128 = sbr.rel (%p126) target = $region20
        $region19: #{tpu_custom_call.1} parent=15 // pred_region
          %s129 = sand.u32 %s39, 1
          %s130 = scalar_lea.sflag [#allocation4], %s129
          %s131 = sand.u32 %s39, 1
          %s132 = smul.addr %s131, 16
          %s133 = scalar_lea.vmem [#allocation3], %s132
          %s134 = smul.u32 4, %s23
          %s136 = ssub.s32 256, 256
          %137 = vsyncadd %s130, %s136
          %s138 = smul.addr %s22, 8
          %s139 = sadd.s32 %s134, %s138
          %s140 = smul.addr %s139, 64
          %s141 = scalar_lea.hbm %s0, %s140
          %s143 = sshll.u32 %s133, 4
          %s144 = int_to_ptr.vmem [resolvable:$true] %s143
          %146 = dma.hbm_to_vmem [thread:$0]  %s141, 256, %s144, %s130
        $region20: #{tpu_custom_call.1} parent=15 // pred_fallthru
          _
        // Predicated region
        $region21: #{tpu_custom_call.1} parent=15 // pred_check
          %p147 = pneg %p75
        $region22: #{tpu_custom_call.1} parent=15 // pred_check_branch
          %149 = sbr.rel (%p147) target = $region24
        $region23: #{tpu_custom_call.1} parent=15 // pred_region
          %s150 = sand.u32 %s65, 1
          %s151 = scalar_lea.sflag [#allocation7], %s150
          %s152 = sand.u32 %s65, 1
          %s153 = smul.addr %s152, 512
          %s154 = scalar_lea.vmem [#allocation6], %s153
          %s155 = smul.u32 64, %s23
          %s157 = ssub.s32 8192, 8192
          %158 = vsyncadd %s151, %s157
          %s159 = smul.addr %s155, 2
          %s160 = smul.addr %s159, 64
          %s161 = scalar_lea.hbm %s1, %s160
          %s162 = sshll.u32 %s154, 4
          %s163 = int_to_ptr.vmem [resolvable:$true] %s162
          %168 = dma.hbm_to_vmem [thread:$0]  %s161, 8192, %s163, %s151, 128, 128, 8
        $region24: #{tpu_custom_call.1} parent=15 // pred_fallthru
          _
      $region16: #{tpu_custom_call.1} parent=5 // pred_fallthru
        _
      %p169 = scmp.le.s32.totalorder 1, %s15
      %p170 = scmp.lt.s32.totalorder %s15, 3
      %p171 = pnand %p169, %p170
      %p172 = pneg %p171
      // Predicated region
      $region25: #{tpu_custom_call.1} parent=5 // pred_check
        _
      $region26: #{tpu_custom_call.1} parent=5 // pred_check_branch
        %174 = sbr.rel (%p171) target = $region28
      $region27: #{tpu_custom_call.1} parent=5 // pred_region
        %s175 = ssub.s32 %s15, 1
        %s176 = sand.u32 %s42, 1
        %s177 = scalar_lea.sflag [#allocation4], %s176
        %s178 = sand.u32 %s42, 1
        %s179 = smul.addr %s178, 16
        %s180 = scalar_lea.vmem [#allocation3], %s179
        // Predicated region
        $region29: #{tpu_custom_call.1} parent=27 // pred_check
          %p181 = pneg %p55
        $region30: #{tpu_custom_call.1} parent=27 // pred_check_branch
          %183 = sbr.rel (%p181) target = $region32
        $region31: #{tpu_custom_call.1} parent=27 // pred_region
          %184 = dma.done %s177, 256
        $region32: #{tpu_custom_call.1} parent=27 // pred_fallthru
          _
        %s185 = sand.u32 %s68, 1
        %s186 = scalar_lea.sflag [#allocation7], %s185
        %s187 = sand.u32 %s68, 1
        %s188 = smul.addr %s187, 512
        %s189 = scalar_lea.vmem [#allocation6], %s188
        // Predicated region
        $region33: #{tpu_custom_call.1} parent=27 // pred_check
          %p190 = pneg %p81
        $region34: #{tpu_custom_call.1} parent=27 // pred_check_branch
          %192 = sbr.rel (%p190) target = $region36
        $region35: #{tpu_custom_call.1} parent=27 // pred_region
          %193 = dma.done %s186, 8192
        $region36: #{tpu_custom_call.1} parent=27 // pred_fallthru
          _
        %s194 = sand.u32 %s42, 1
        %s195 = scalar_lea.sflag [#allocation4], %s194
        %s196 = sand.u32 %s42, 1
        %s197 = smul.addr %s196, 16
        %s198 = scalar_lea.vmem [#allocation3], %s197
        %p199 = pneg %p55
        %p200 = pneg %p52
        %s201 = sand.u32 %s68, 1
        %s202 = scalar_lea.sflag [#allocation7], %s201
        %s203 = sand.u32 %s68, 1
        %s204 = smul.addr %s203, 512
        %s205 = scalar_lea.vmem [#allocation6], %s204
        %p206 = pneg %p81
        %p207 = pneg %p78
        %p208 = pneg %p107
        %p209 = pneg %p104
        %s210 = smul.u32 4, %s25
        %s211 = smul.u32 64, %s25
        %p212 = scmp.eq.s32.totalorder %s25, 0
        // Predicated region
        $region37: #{tpu_custom_call.1} parent=27 // pred_check
          %p213 = pneg %p212
        $region38: #{tpu_custom_call.1} parent=27 // pred_check_branch
          %215 = sbr.rel (%p213) target = $region40
        $region39: #{tpu_custom_call.1} parent=27 // pred_region
          %216 = vst [vmem:[#allocation2] sm:$0xff] 0.0
          %217 = vst [vmem:[#allocation2 + $0x8] sm:$0xff] 0.0
        $region40: #{tpu_custom_call.1} parent=27 // pred_fallthru
          _
        %v218 = vld [vmem:[#allocation2] sm:$0xff]
        %v219 = vld [vmem:[#allocation2 + $0x8] sm:$0xff]
        %v220 = vld [vmem:[%s180] sm:$0xff]
        %v221 = vld [vmem:[%s180 + $0x8] sm:$0xff]
        %v222 = vld [vmem:[%s189] sm:$0xff]
        %v223 = vld [vmem:[%s189 + $0x8] sm:$0xff]
        %v224 = vld [vmem:[%s189 + $0x10] sm:$0xff]
        %v225 = vld [vmem:[%s189 + $0x18] sm:$0xff]
        %v226 = vld [vmem:[%s189 + $0x20] sm:$0xff]
        %v227 = vld [vmem:[%s189 + $0x28] sm:$0xff]
        %v228 = vld [vmem:[%s189 + $0x30] sm:$0xff]
        %v229 = vld [vmem:[%s189 + $0x38] sm:$0xff]
        %v230 = vld [vmem:[%s189 + $0x40] sm:$0xff]
        %v231 = vld [vmem:[%s189 + $0x48] sm:$0xff]
        %v232 = vld [vmem:[%s189 + $0x50] sm:$0xff]
        %v233 = vld [vmem:[%s189 + $0x58] sm:$0xff]
        %v234 = vld [vmem:[%s189 + $0x60] sm:$0xff]
        %v235 = vld [vmem:[%s189 + $0x68] sm:$0xff]
        %v236 = vld [vmem:[%s189 + $0x70] sm:$0xff]
        %v237 = vld [vmem:[%s189 + $0x78] sm:$0xff]
        %v238 = vld [vmem:[%s189 + $0x80] sm:$0xff]
        %v239 = vld [vmem:[%s189 + $0x88] sm:$0xff]
        %v240 = vld [vmem:[%s189 + $0x90] sm:$0xff]
        %v241 = vld [vmem:[%s189 + $0x98] sm:$0xff]
        %v242 = vld [vmem:[%s189 + $0xa0] sm:$0xff]
        %v243 = vld [vmem:[%s189 + $0xa8] sm:$0xff]
        %v244 = vld [vmem:[%s189 + $0xb0] sm:$0xff]
        %v245 = vld [vmem:[%s189 + $0xb8] sm:$0xff]
        %v246 = vld [vmem:[%s189 + $0xc0] sm:$0xff]
        %v247 = vld [vmem:[%s189 + $0xc8] sm:$0xff]
        %v248 = vld [vmem:[%s189 + $0xd0] sm:$0xff]
        %v249 = vld [vmem:[%s189 + $0xd8] sm:$0xff]
        %v250 = vld [vmem:[%s189 + $0xe0] sm:$0xff]
        %v251 = vld [vmem:[%s189 + $0xe8] sm:$0xff]
        %v252 = vld [vmem:[%s189 + $0xf0] sm:$0xff]
        %v253 = vld [vmem:[%s189 + $0xf8] sm:$0xff]
        %v254 = vld [vmem:[%s189 + $0x100] sm:$0xff]
        %v255 = vld [vmem:[%s189 + $0x108] sm:$0xff]
        %v256 = vld [vmem:[%s189 + $0x110] sm:$0xff]
        %v257 = vld [vmem:[%s189 + $0x118] sm:$0xff]
        %v258 = vld [vmem:[%s189 + $0x120] sm:$0xff]
        %v259 = vld [vmem:[%s189 + $0x128] sm:$0xff]
        %v260 = vld [vmem:[%s189 + $0x130] sm:$0xff]
        %v261 = vld [vmem:[%s189 + $0x138] sm:$0xff]
        %v262 = vld [vmem:[%s189 + $0x140] sm:$0xff]
        %v263 = vld [vmem:[%s189 + $0x148] sm:$0xff]
        %v264 = vld [vmem:[%s189 + $0x150] sm:$0xff]
        %v265 = vld [vmem:[%s189 + $0x158] sm:$0xff]
        %v266 = vld [vmem:[%s189 + $0x160] sm:$0xff]
        %v267 = vld [vmem:[%s189 + $0x168] sm:$0xff]
        %v268 = vld [vmem:[%s189 + $0x170] sm:$0xff]
        %v269 = vld [vmem:[%s189 + $0x178] sm:$0xff]
        %v270 = vld [vmem:[%s189 + $0x180] sm:$0xff]
        %v271 = vld [vmem:[%s189 + $0x188] sm:$0xff]
        %v272 = vld [vmem:[%s189 + $0x190] sm:$0xff]
        %v273 = vld [vmem:[%s189 + $0x198] sm:$0xff]
        %v274 = vld [vmem:[%s189 + $0x1a0] sm:$0xff]
        %v275 = vld [vmem:[%s189 + $0x1a8] sm:$0xff]
        %v276 = vld [vmem:[%s189 + $0x1b0] sm:$0xff]
        %v277 = vld [vmem:[%s189 + $0x1b8] sm:$0xff]
        %v278 = vld [vmem:[%s189 + $0x1c0] sm:$0xff]
        %v279 = vld [vmem:[%s189 + $0x1c8] sm:$0xff]
        %v280 = vld [vmem:[%s189 + $0x1d0] sm:$0xff]
        %v281 = vld [vmem:[%s189 + $0x1d8] sm:$0xff]
        %v282 = vld [vmem:[%s189 + $0x1e0] sm:$0xff]
        %v283 = vld [vmem:[%s189 + $0x1e8] sm:$0xff]
        %v284 = vld [vmem:[%s189 + $0x1f0] sm:$0xff]
        %v285 = vld [vmem:[%s189 + $0x1f8] sm:$0xff]
        %v288 = vunpack.c.l.b16 %v220
        %v289 = vunpack.c.h.b16 %v220
        %v290 = vunpack.c.l.b16 %v221
        %v291 = vunpack.c.h.b16 %v221
        %v292 = vpack.c.b16 %v288, %v288
        %v293 = vpack.c.b16 %v289, %v289
        %v294 = vpack.c.b16 %v290, %v290
        %v295 = vpack.c.b16 %v291, %v291
        %v364 = vunpack.c.l.b16 %v222
        %v365 = vunpack.c.h.b16 %v222
        %v366 = vunpack.c.l.b16 %v223
        %v367 = vunpack.c.h.b16 %v223
        %v368 = vunpack.c.l.b16 %v224
        %v369 = vunpack.c.h.b16 %v224
        %v370 = vunpack.c.l.b16 %v225
        %v371 = vunpack.c.h.b16 %v225
        %v372 = vunpack.c.l.b16 %v226
        %v373 = vunpack.c.h.b16 %v226
        %v374 = vunpack.c.l.b16 %v227
        %v375 = vunpack.c.h.b16 %v227
        %v376 = vunpack.c.l.b16 %v228
        %v377 = vunpack.c.h.b16 %v228
        %v378 = vunpack.c.l.b16 %v229
        %v379 = vunpack.c.h.b16 %v229
        %v380 = vunpack.c.l.b16 %v230
        %v381 = vunpack.c.h.b16 %v230
        %v382 = vunpack.c.l.b16 %v231
        %v383 = vunpack.c.h.b16 %v231
        %v384 = vunpack.c.l.b16 %v232
        %v385 = vunpack.c.h.b16 %v232
        %v386 = vunpack.c.l.b16 %v233
        %v387 = vunpack.c.h.b16 %v233
        %v388 = vunpack.c.l.b16 %v234
        %v389 = vunpack.c.h.b16 %v234
        %v390 = vunpack.c.l.b16 %v235
        %v391 = vunpack.c.h.b16 %v235
        %v392 = vunpack.c.l.b16 %v236
        %v393 = vunpack.c.h.b16 %v236
        %v394 = vunpack.c.l.b16 %v237
        %v395 = vunpack.c.h.b16 %v237
        %v396 = vunpack.c.l.b16 %v238
        %v397 = vunpack.c.h.b16 %v238
        %v398 = vunpack.c.l.b16 %v239
        %v399 = vunpack.c.h.b16 %v239
        %v400 = vunpack.c.l.b16 %v240
        %v401 = vunpack.c.h.b16 %v240
        %v402 = vunpack.c.l.b16 %v241
        %v403 = vunpack.c.h.b16 %v241
        %v404 = vunpack.c.l.b16 %v242
        %v405 = vunpack.c.h.b16 %v242
        %v406 = vunpack.c.l.b16 %v243
        %v407 = vunpack.c.h.b16 %v243
        %v408 = vunpack.c.l.b16 %v244
        %v409 = vunpack.c.h.b16 %v244
        %v410 = vunpack.c.l.b16 %v245
        %v411 = vunpack.c.h.b16 %v245
        %v412 = vunpack.c.l.b16 %v246
        %v413 = vunpack.c.h.b16 %v246
        %v414 = vunpack.c.l.b16 %v247
        %v415 = vunpack.c.h.b16 %v247
        %v416 = vunpack.c.l.b16 %v248
        %v417 = vunpack.c.h.b16 %v248
        %v418 = vunpack.c.l.b16 %v249
        %v419 = vunpack.c.h.b16 %v249
        %v420 = vunpack.c.l.b16 %v250
        %v421 = vunpack.c.h.b16 %v250
        %v422 = vunpack.c.l.b16 %v251
        %v423 = vunpack.c.h.b16 %v251
        %v424 = vunpack.c.l.b16 %v252
        %v425 = vunpack.c.h.b16 %v252
        %v426 = vunpack.c.l.b16 %v253
        %v427 = vunpack.c.h.b16 %v253
        %v428 = vunpack.c.l.b16 %v254
        %v429 = vunpack.c.h.b16 %v254
        %v430 = vunpack.c.l.b16 %v255
        %v431 = vunpack.c.h.b16 %v255
        %v432 = vunpack.c.l.b16 %v256
        %v433 = vunpack.c.h.b16 %v256
        %v434 = vunpack.c.l.b16 %v257
        %v435 = vunpack.c.h.b16 %v257
        %v436 = vunpack.c.l.b16 %v258
        %v437 = vunpack.c.h.b16 %v258
        %v438 = vunpack.c.l.b16 %v259
        %v439 = vunpack.c.h.b16 %v259
        %v440 = vunpack.c.l.b16 %v260
        %v441 = vunpack.c.h.b16 %v260
        %v442 = vunpack.c.l.b16 %v261
        %v443 = vunpack.c.h.b16 %v261
        %v444 = vunpack.c.l.b16 %v262
        %v445 = vunpack.c.h.b16 %v262
        %v446 = vunpack.c.l.b16 %v263
        %v447 = vunpack.c.h.b16 %v263
        %v448 = vunpack.c.l.b16 %v264
        %v449 = vunpack.c.h.b16 %v264
        %v450 = vunpack.c.l.b16 %v265
        %v451 = vunpack.c.h.b16 %v265
        %v452 = vunpack.c.l.b16 %v266
        %v453 = vunpack.c.h.b16 %v266
        %v454 = vunpack.c.l.b16 %v267
        %v455 = vunpack.c.h.b16 %v267
        %v456 = vunpack.c.l.b16 %v268
        %v457 = vunpack.c.h.b16 %v268
        %v458 = vunpack.c.l.b16 %v269
        %v459 = vunpack.c.h.b16 %v269
        %v460 = vunpack.c.l.b16 %v270
        %v461 = vunpack.c.h.b16 %v270
        %v462 = vunpack.c.l.b16 %v271
        %v463 = vunpack.c.h.b16 %v271
        %v464 = vunpack.c.l.b16 %v272
        %v465 = vunpack.c.h.b16 %v272
        %v466 = vunpack.c.l.b16 %v273
        %v467 = vunpack.c.h.b16 %v273
        %v468 = vunpack.c.l.b16 %v274
        %v469 = vunpack.c.h.b16 %v274
        %v470 = vunpack.c.l.b16 %v275
        %v471 = vunpack.c.h.b16 %v275
        %v472 = vunpack.c.l.b16 %v276
        %v473 = vunpack.c.h.b16 %v276
        %v474 = vunpack.c.l.b16 %v277
        %v475 = vunpack.c.h.b16 %v277
        %v476 = vunpack.c.l.b16 %v278
        %v477 = vunpack.c.h.b16 %v278
        %v478 = vunpack.c.l.b16 %v279
        %v479 = vunpack.c.h.b16 %v279
        %v480 = vunpack.c.l.b16 %v280
        %v481 = vunpack.c.h.b16 %v280
        %v482 = vunpack.c.l.b16 %v281
        %v483 = vunpack.c.h.b16 %v281
        %v484 = vunpack.c.l.b16 %v282
        %v485 = vunpack.c.h.b16 %v282
        %v486 = vunpack.c.l.b16 %v283
        %v487 = vunpack.c.h.b16 %v283
        %v488 = vunpack.c.l.b16 %v284
        %v489 = vunpack.c.h.b16 %v284
        %v490 = vunpack.c.l.b16 %v285
        %v491 = vunpack.c.h.b16 %v285
        %v492 = vpack.c.b16 %v366, %v364
        %v493 = vpack.c.b16 %v367, %v365
        %v494 = vpack.c.b16 %v370, %v368
        %v495 = vpack.c.b16 %v371, %v369
        %v496 = vpack.c.b16 %v374, %v372
        %v497 = vpack.c.b16 %v375, %v373
        %v498 = vpack.c.b16 %v378, %v376
        %v499 = vpack.c.b16 %v379, %v377
        %v500 = vpack.c.b16 %v382, %v380
        %v501 = vpack.c.b16 %v383, %v381
        %v502 = vpack.c.b16 %v386, %v384
        %v503 = vpack.c.b16 %v387, %v385
        %v504 = vpack.c.b16 %v390, %v388
        %v505 = vpack.c.b16 %v391, %v389
        %v506 = vpack.c.b16 %v394, %v392
        %v507 = vpack.c.b16 %v395, %v393
        %v508 = vpack.c.b16 %v398, %v396
        %v509 = vpack.c.b16 %v399, %v397
        %v510 = vpack.c.b16 %v402, %v400
        %v511 = vpack.c.b16 %v403, %v401
        %v512 = vpack.c.b16 %v406, %v404
        %v513 = vpack.c.b16 %v407, %v405
        %v514 = vpack.c.b16 %v410, %v408
        %v515 = vpack.c.b16 %v411, %v409
        %v516 = vpack.c.b16 %v414, %v412
        %v517 = vpack.c.b16 %v415, %v413
        %v518 = vpack.c.b16 %v418, %v416
        %v519 = vpack.c.b16 %v419, %v417
        %v520 = vpack.c.b16 %v422, %v420
        %v521 = vpack.c.b16 %v423, %v421
        %v522 = vpack.c.b16 %v426, %v424
        %v523 = vpack.c.b16 %v427, %v425
        %v524 = vpack.c.b16 %v430, %v428
        %v525 = vpack.c.b16 %v431, %v429
        %v526 = vpack.c.b16 %v434, %v432
        %v527 = vpack.c.b16 %v435, %v433
        %v528 = vpack.c.b16 %v438, %v436
        %v529 = vpack.c.b16 %v439, %v437
        %v530 = vpack.c.b16 %v442, %v440
        %v531 = vpack.c.b16 %v443, %v441
        %v532 = vpack.c.b16 %v446, %v444
        %v533 = vpack.c.b16 %v447, %v445
        %v534 = vpack.c.b16 %v450, %v448
        %v535 = vpack.c.b16 %v451, %v449
        %v536 = vpack.c.b16 %v454, %v452
        %v537 = vpack.c.b16 %v455, %v453
        %v538 = vpack.c.b16 %v458, %v456
        %v539 = vpack.c.b16 %v459, %v457
        %v540 = vpack.c.b16 %v462, %v460
        %v541 = vpack.c.b16 %v463, %v461
        %v542 = vpack.c.b16 %v466, %v464
        %v543 = vpack.c.b16 %v467, %v465
        %v544 = vpack.c.b16 %v470, %v468
        %v545 = vpack.c.b16 %v471, %v469
        %v546 = vpack.c.b16 %v474, %v472
        %v547 = vpack.c.b16 %v475, %v473
        %v548 = vpack.c.b16 %v478, %v476
        %v549 = vpack.c.b16 %v479, %v477
        %v550 = vpack.c.b16 %v482, %v480
        %v551 = vpack.c.b16 %v483, %v481
        %v552 = vpack.c.b16 %v486, %v484
        %v553 = vpack.c.b16 %v487, %v485
        %v554 = vpack.c.b16 %v490, %v488
        %v555 = vpack.c.b16 %v491, %v489
        %620 = vmatprep.subr.bf16.mxu0 %v507
        %621 = vmatpush1.bf16.msra.mxu0 %v506
        %622 = vmatprep.subr.bf16.mxu0 %v505
        %623 = vmatpush1.bf16.msra.mxu0 %v504
        %624 = vmatprep.subr.bf16.mxu0 %v503
        %625 = vmatpush1.bf16.msra.mxu0 %v502
        %626 = vmatprep.subr.bf16.mxu0 %v501
        %627 = vmatpush1.bf16.msra.mxu0 %v500
        %628 = vmatprep.subr.bf16.mxu0 %v499
        %629 = vmatpush1.bf16.msra.mxu0 %v498
        %630 = vmatprep.subr.bf16.mxu0 %v497
        %631 = vmatpush1.bf16.msra.mxu0 %v496
        %632 = vmatprep.subr.bf16.mxu0 %v495
        %633 = vmatpush1.bf16.msra.mxu0 %v494
        %634 = vmatprep.subr.bf16.mxu0 %v493
        %635 = vmatpush1.bf16.msra.mxu0 %v492
        %636 = vmatprep.subr.bf16.mxu0 %v523
        %637 = vmatpush2.bf16.msra.mxu0 %v522
        %638 = vmatprep.subr.bf16.mxu0 %v521
        %639 = vmatpush2.bf16.msra.mxu0 %v520
        %640 = vmatprep.subr.bf16.mxu0 %v519
        %641 = vmatpush2.bf16.msra.mxu0 %v518
        %642 = vmatprep.subr.bf16.mxu0 %v517
        %643 = vmatpush2.bf16.msra.mxu0 %v516
        %644 = vmatprep.subr.bf16.mxu0 %v515
        %645 = vmatpush2.bf16.msra.mxu0 %v514
        %646 = vmatprep.subr.bf16.mxu0 %v513
        %647 = vmatpush2.bf16.msra.mxu0 %v512
        %648 = vmatprep.subr.bf16.mxu0 %v511
        %649 = vmatpush2.bf16.msra.mxu0 %v510
        %650 = vmatprep.subr.bf16.mxu0 %v509
        %651 = vmatpush2.bf16.msra.mxu0 %v508
        %652 = vmatprep.mubr.bf16.mxu0 %v293
        %653 = vmatmul.mubr.bf16.gmra.mxu0 %v292
        %v654 = vpop.f32.mrf.mxu0
        %v655 = vadd.f32 0.0, %v654
        %v656 = vpop.f32.mrf.mxu0
        %v657 = vadd.f32 0.0, %v656
        %v658 = vpop.f32.mrf.mxu0
        %v659 = vpop.f32.mrf.mxu0
        %660 = vdwg.mxu0
        %661 = vmatprep.subr.bf16.mxu0 %v539
        %662 = vmatpush1.bf16.msra.mxu0 %v538
        %663 = vmatprep.subr.bf16.mxu0 %v537
        %664 = vmatpush1.bf16.msra.mxu0 %v536
        %665 = vmatprep.subr.bf16.mxu0 %v535
        %666 = vmatpush1.bf16.msra.mxu0 %v534
        %667 = vmatprep.subr.bf16.mxu0 %v533
        %668 = vmatpush1.bf16.msra.mxu0 %v532
        %669 = vmatprep.subr.bf16.mxu0 %v531
        %670 = vmatpush1.bf16.msra.mxu0 %v530
        %671 = vmatprep.subr.bf16.mxu0 %v529
        %672 = vmatpush1.bf16.msra.mxu0 %v528
        %673 = vmatprep.subr.bf16.mxu0 %v527
        %674 = vmatpush1.bf16.msra.mxu0 %v526
        %675 = vmatprep.subr.bf16.mxu0 %v525
        %676 = vmatpush1.bf16.msra.mxu0 %v524
        %677 = vmatprep.subr.bf16.mxu0 %v555
        %678 = vmatpush2.bf16.msra.mxu0 %v554
        %679 = vmatprep.subr.bf16.mxu0 %v553
        %680 = vmatpush2.bf16.msra.mxu0 %v552
        %681 = vmatprep.subr.bf16.mxu0 %v551
        %682 = vmatpush2.bf16.msra.mxu0 %v550
        %683 = vmatprep.subr.bf16.mxu0 %v549
        %684 = vmatpush2.bf16.msra.mxu0 %v548
        %685 = vmatprep.subr.bf16.mxu0 %v547
        %686 = vmatpush2.bf16.msra.mxu0 %v546
        %687 = vmatprep.subr.bf16.mxu0 %v545
        %688 = vmatpush2.bf16.msra.mxu0 %v544
        %689 = vmatprep.subr.bf16.mxu0 %v543
        %690 = vmatpush2.bf16.msra.mxu0 %v542
        %691 = vmatprep.subr.bf16.mxu0 %v541
        %692 = vmatpush2.bf16.msra.mxu0 %v540
        %693 = vmatprep.mubr.bf16.mxu0 %v295
        %694 = vmatmul.mubr.bf16.gmra.mxu0 %v294
        %v695 = vpop.f32.mrf.mxu0
        %v696 = vadd.f32 %v655, %v695
        %v697 = vpop.f32.mrf.mxu0
        %v698 = vadd.f32 %v657, %v697
        %v699 = vpop.f32.mrf.mxu0
        %v700 = vpop.f32.mrf.mxu0
        %701 = vdwg.mxu0
        %v702 = vadd.f32 %v218, %v696
        %v703 = vadd.f32 %v219, %v698
        %704 = vst [vmem:[#allocation2] sm:$0xff] %v702
        %705 = vst [vmem:[#allocation2 + $0x8] sm:$0xff] %v703
        %p706 = scmp.eq.s32.totalorder %s25, 1
        // Predicated region
        $region41: #{tpu_custom_call.1} parent=27 // pred_check
          %p707 = pneg %p706
        $region42: #{tpu_custom_call.1} parent=27 // pred_check_branch
          %709 = sbr.rel (%p707) target = $region44
        $region43: #{tpu_custom_call.1} parent=27 // pred_region
          %v710 = vld [vmem:[#allocation2] sm:$0xff]
          %v711 = vld [vmem:[#allocation2 + $0x8] sm:$0xff]
          %v712 = vmul.f32 %v710, %v710
          %v713 = vmul.f32 %v711, %v711
          %v714 = vadd.f32 %v712, %v713
          %715 = vadd.xlane.f32.xlu0 %v714
          %v716 = vpop.xlane.xlu0 %715
          %v717 = vrsqrt.pop %v716
          %v718 = vmul.f32 %v710, %v717
          %v719 = vmul.f32 %v711, %v717
          %720 = vst [vmem:[#allocation8] sm:$0xff] %v718
          %721 = vst [vmem:[#allocation8 + $0x8] sm:$0xff] %v719
        $region44: #{tpu_custom_call.1} parent=27 // pred_fallthru
          _
        // Predicated region
        $region45: #{tpu_custom_call.1} parent=27 // pred_check
          %p722 = pneg %p104
        $region46: #{tpu_custom_call.1} parent=27 // pred_check_branch
          %724 = sbr.rel (%p722) target = $region48
        $region47: #{tpu_custom_call.1} parent=27 // pred_region
          %s726 = ssub.s32 256, 256
          %727 = vsyncadd [#allocation5], %s726
          %s728 = smul.addr %s24, 2
          %s729 = smul.addr %s728, 128
          %s730 = scalar_lea.hbm %s2, %s729
          %s732 = sshll.u32 [#allocation8], 4
          %s733 = int_to_ptr.vmem [resolvable:$true] %s732
          %735 = dma.vmem_to_hbm [thread:$0]  %s733, 256, %s730, [#allocation5]
        $region48: #{tpu_custom_call.1} parent=27 // pred_fallthru
          _
        // Predicated region
        $region49: #{tpu_custom_call.1} parent=27 // pred_check
          %p736 = pneg %p104
        $region50: #{tpu_custom_call.1} parent=27 // pred_check_branch
          %738 = sbr.rel (%p736) target = $region52
        $region51: #{tpu_custom_call.1} parent=27 // pred_region
          %739 = dma.done [#allocation5], 256
        $region52: #{tpu_custom_call.1} parent=27 // pred_fallthru
          _
      $region28: #{tpu_custom_call.1} parent=5 // pred_fallthru
        _
      %p740 = scmp.le.s32.totalorder 2, %s15
      // Predicated region
      $region53: #{tpu_custom_call.1} parent=5 // pred_check
        %p741 = pneg %p740
      $region54: #{tpu_custom_call.1} parent=5 // pred_check_branch
        %743 = sbr.rel (%p741) target = $region56
      $region55: #{tpu_custom_call.1} parent=5 // pred_region
        %s744 = ssub.s32 %s15, 2
      $region56: #{tpu_custom_call.1} parent=5 // pred_fallthru
        _
    $region6: #{tpu_custom_call.1} parent=1 // loop_footer
      %s19 = sadd.s32 1, %s15
    $region7: #{tpu_custom_call.1} parent=1 // loop_footer_branch
      %14 = sbr.rel target = $region3
    $region8: #{tpu_custom_call.1} parent=1 // loop_exit
      _
    %745 = vsyncpa [#allocation4], 1
    %s746 = scalar_lea.sflag [#allocation4], 1
    %747 = vsyncpa %s746, 1
    %748 = vsyncpa [#allocation7], 1
    %s749 = scalar_lea.sflag [#allocation7], 1
    %750 = vsyncpa %s749, 1
    %751 = vsyncpa [#allocation5], 1
    %s752 = scalar_lea.sflag [#allocation5], 1
    %753 = vsyncpa %s752, 1

</llo_original>
